<compile_context>
chip_gen: v6e
topology: v6e:2x2x1
jax: 0.10.0
libtpu: 0.0.40
codegen_flags: <defaults>
</compile_context>

<pallas_src>
import jax
import jax.numpy as jnp
from jax.experimental import pallas as pl
from jax.experimental.pallas import tpu as pltpu


def mlp_kernel(x_ref, w1_ref, b1_ref, w2_ref, b2_ref, o_ref):
    # x tile is f32 (streamed from HBM); weights arrive pre-cast to bf16.
    x = x_ref[...].astype(jnp.bfloat16)                       # (TB, D)

    # Linear(dim, 128): bf16 MXU inputs, f32 accumulate, f32 bias add.
    h = jnp.dot(x, w1_ref[...], preferred_element_type=jnp.float32) + b1_ref[...]

    # Linear(128, num_class): w2/b2 padded to 128 lanes; padded bias is -1e30
    # so padded logits contribute exactly 0 after exp.
    logits = jnp.dot(h.astype(jnp.bfloat16), w2_ref[...],
                     preferred_element_type=jnp.float32) + b2_ref[...]

    # Softmax(dim=1), numerically stable, f32 throughout.  Exact division is
    # essentially free here (kernel is HBM-bandwidth-bound).
    m = jnp.max(logits, axis=1, keepdims=True)
    e = jnp.exp(logits - m)
    denom = jnp.sum(e, axis=1, keepdims=True)
    o_ref[...] = e / denom


def _round_up(n, m):
    return ((n + m - 1) // m) * m


def _vmem_estimate(block_b, D, Cp, H=128):
    """Rough VMEM bytes: double-buffered f32 x/out tiles + (double-buffered)
    bf16 weights + f32 biases."""
    x_io = 2 * block_b * D * 4
    o_io = 2 * block_b * Cp * 4
    w = 2 * (D * H + H * Cp) * 2
    b = 2 * (H + Cp) * 4
    return x_io + o_io + w + b


def _choose_block_b(B, D, Cp, budget_bytes, H=128):
    """Largest batch tile that fits the VMEM budget, with >=2 grid steps for
    medium/large batches so both v7x TensorCores get work."""
    per_row = 2 * (D + Cp) * 4                      # double-buffered x + out rows
    fixed = 2 * (D * H + H * Cp) * 2 + 2 * (H + Cp) * 4
    avail = max(budget_bytes - fixed, per_row * 8)
    cap = max(8, min((avail // per_row) // 8 * 8, 2048))
    if B <= cap:
        if B > 256:
            # split into >= 2 grid steps (megacore) while staying under budget
            return min(_round_up(pl.cdiv(B, 2), 8), cap)
        return B                                    # full-dim block is always legal
    return min(cap, 1024)                           # B > cap -> grid >= 2 automatically


def mlp_forward(x, w1, b1, w2, b2, *, block_b=None):
    """x: (B, D); w1: (D, 128); b1: (1, 128); w2: (128, C); b2: (1, C)."""
    x = x.astype(jnp.float32)                       # matches x.to(torch.float32)
    B, D = x.shape
    H = w1.shape[1]
    C = w2.shape[1]
    LANE = 128

    # Lane-dense output: pad classes to 128 with zero weight columns and a
    # -1e30 bias so the padded softmax equals the real one (wrapper slices).
    Cp = _round_up(C, LANE)
    if Cp != C:
        w2 = jnp.pad(w2, ((0, 0), (0, Cp - C)))
        b2 = jnp.pad(b2, ((0, 0), (0, Cp - C)), constant_values=-1e30)

    # One-time bf16 cast of the VMEM-resident weights; biases stay f32.
    w1 = w1.astype(jnp.bfloat16)
    w2 = w2.astype(jnp.bfloat16)
    b1 = b1.astype(jnp.float32)
    b2 = b2.astype(jnp.float32)

    budget = 48 << 20                               # safe on v7x's 64 MiB VMEM
    if block_b is None:
        block_b = _choose_block_b(B, D, Cp, budget, H)
    grid = (pl.cdiv(B, block_b),)                   # ragged tail handled by Pallas;
                                                    # garbage rows are sliced off below
    est = _vmem_estimate(block_b, D, Cp, H)
    vmem_limit = int(min(max(est + (4 << 20), 32 << 20), 56 << 20))

    out = pl.pallas_call(
        mlp_kernel,
        out_shape=jax.ShapeDtypeStruct((B, Cp), jnp.float32),
        grid=grid,
        in_specs=[
            pl.BlockSpec((block_b, D), lambda i: (i, 0)),   # x: tiled over batch, true D
            pl.BlockSpec((D, H), lambda i: (0, 0)),         # w1: VMEM-resident bf16
            pl.BlockSpec((1, H), lambda i: (0, 0)),         # b1 (f32)
            pl.BlockSpec((H, Cp), lambda i: (0, 0)),        # w2: VMEM-resident bf16
            pl.BlockSpec((1, Cp), lambda i: (0, 0)),        # b2 (f32, -1e30 padding)
        ],
        out_specs=pl.BlockSpec((block_b, Cp), lambda i: (i, 0)),
        compiler_params=pltpu.CompilerParams(
            dimension_semantics=("parallel",),
            vmem_limit_bytes=vmem_limit,
        ),
    )(x, w1, b1, w2, b2)

    return out[:, :C]


def init_params(key, dim, hidden=128, num_class=2):
    """Deterministic init mimicking torch.nn.Linear's U(-1/sqrt(in), 1/sqrt(in))."""
    k1, k2, k3, k4 = jax.random.split(key, 4)
    bound1 = 1.0 / jnp.sqrt(jnp.float32(dim))
    bound2 = 1.0 / jnp.sqrt(jnp.float32(hidden))
    # stored directly as (in, out) so the kernel avoids a transpose
    w1 = jax.random.uniform(k1, (dim, hidden), jnp.float32, -bound1, bound1)
    b1 = jax.random.uniform(k2, (1, hidden), jnp.float32, -bound1, bound1)
    w2 = jax.random.uniform(k3, (hidden, num_class), jnp.float32, -bound2, bound2)
    b2 = jax.random.uniform(k4, (1, num_class), jnp.float32, -bound2, bound2)
    return w1, b1, w2, b2


if __name__ == "__main__":
    key = jax.random.PRNGKey(0)
    k_x, k_p = jax.random.split(key)

    B, D, C = 8, 32, 2
    x = jax.random.normal(k_x, (B, D), jnp.float32)
    w1, b1, w2, b2 = init_params(k_p, D, hidden=128, num_class=C)

    out = jax.block_until_ready(mlp_forward(x, w1, b1, w2, b2))

    # Plain-JAX f32 reference; kernel uses bf16 MXU inputs, so compare with
    # tolerances matching bf16 precision.  Softmax division is exact, so rows
    # sum to 1 tightly.
    ref = jax.nn.softmax((x @ w1 + b1) @ w2 + b2, axis=1)
    assert out.shape == (B, C)
    assert jnp.allclose(jnp.sum(out, axis=1), 1.0, atol=1e-3)
    assert jnp.allclose(out, ref, atol=2e-2, rtol=2e-2)

    print("KERNEL_OK")
</pallas_src>

<mosaic_0001>
module attributes {stable_mosaic.version = 11 : i64} {
  func.func @mlp_kernel(%arg0: i32, %arg1: memref<8x32xf32, #tpu.memory_space<vmem>>, %arg2: memref<32x128xbf16, #tpu.memory_space<vmem>>, %arg3: memref<1x128xf32, #tpu.memory_space<vmem>>, %arg4: memref<128x128xbf16, #tpu.memory_space<vmem>>, %arg5: memref<1x128xf32, #tpu.memory_space<vmem>>, %arg6: memref<8x128xf32, #tpu.memory_space<vmem>>) attributes {dimension_semantics = [#tpu.dimension_semantics<parallel>], iteration_bounds = array<i64: 1>, scalar_prefetch = 0 : i64, scratch_operands = 0 : i64, tpu.core_type = #tpu.core_type<tc>, window_params = [{transform_indices = @transform_0, window_bounds = array<i64: 8, 32>}, {pipeline_mode = #tpu.pipeline_mode<synchronous>, transform_indices = @transform_1, window_bounds = array<i64: 32, 128>}, {pipeline_mode = #tpu.pipeline_mode<synchronous>, transform_indices = @transform_2, window_bounds = array<i64: 1, 128>}, {pipeline_mode = #tpu.pipeline_mode<synchronous>, transform_indices = @transform_3, window_bounds = array<i64: 128, 128>}, {pipeline_mode = #tpu.pipeline_mode<synchronous>, transform_indices = @transform_4, window_bounds = array<i64: 1, 128>}, {transform_indices = @transform_5, window_bounds = array<i64: 8, 128>}]} {
    %c0 = arith.constant 0 : index
    %c0_0 = arith.constant 0 : index
    %0 = vector.load %arg1[%c0, %c0_0] : memref<8x32xf32, #tpu.memory_space<vmem>>, vector<8x32xf32>
    %1 = arith.truncf %0 : vector<8x32xf32> to vector<8x32xbf16>
    %c0_1 = arith.constant 0 : index
    %c0_2 = arith.constant 0 : index
    %2 = vector.load %arg2[%c0_1, %c0_2] : memref<32x128xbf16, #tpu.memory_space<vmem>>, vector<32x128xbf16>
    %cst = arith.constant dense<0.000000e+00> : vector<8x128xf32>
    %3 = tpu.matmul %1, %2, %cst {dimension_numbers = #tpu.dot_dimension_numbers<[1], [0], [0], [1], [0, 0, 1, 1], [], []>} : vector<8x32xbf16>, vector<32x128xbf16>, vector<8x128xf32> -> vector<8x128xf32>
    %c0_3 = arith.constant 0 : index
    %c0_4 = arith.constant 0 : index
    %4 = vector.load %arg3[%c0_3, %c0_4] : memref<1x128xf32, #tpu.memory_space<vmem>>, vector<1x128xf32>
    %5 = vector.broadcast %4 : vector<1x128xf32> to vector<8x128xf32>
    %6 = arith.addf %3, %5 : vector<8x128xf32>
    %7 = arith.truncf %6 : vector<8x128xf32> to vector<8x128xbf16>
    %c0_5 = arith.constant 0 : index
    %c0_6 = arith.constant 0 : index
    %8 = vector.load %arg4[%c0_5, %c0_6] : memref<128x128xbf16, #tpu.memory_space<vmem>>, vector<128x128xbf16>
    %cst_7 = arith.constant dense<0.000000e+00> : vector<8x128xf32>
    %9 = tpu.matmul %7, %8, %cst_7 {dimension_numbers = #tpu.dot_dimension_numbers<[1], [0], [0], [1], [0, 0, 1, 1], [], []>} : vector<8x128xbf16>, vector<128x128xbf16>, vector<8x128xf32> -> vector<8x128xf32>
    %c0_8 = arith.constant 0 : index
    %c0_9 = arith.constant 0 : index
    %10 = vector.load %arg5[%c0_8, %c0_9] : memref<1x128xf32, #tpu.memory_space<vmem>>, vector<1x128xf32>
    %11 = vector.broadcast %10 : vector<1x128xf32> to vector<8x128xf32>
    %12 = arith.addf %9, %11 : vector<8x128xf32>
    %cst_10 = arith.constant dense<0xFF800000> : vector<8xf32>
    %13 = vector.multi_reduction <maximumf>, %12, %cst_10 [1] : vector<8x128xf32> to vector<8xf32>
    %14 = vector.shape_cast %13 : vector<8xf32> to vector<8x1xf32>
    %15 = vector.broadcast %14 : vector<8x1xf32> to vector<8x128xf32>
    %16 = arith.subf %12, %15 : vector<8x128xf32>
    %17 = math.exp %16 : vector<8x128xf32>
    %cst_11 = arith.constant dense<0.000000e+00> : vector<8xf32>
    %18 = vector.multi_reduction <add>, %17, %cst_11 [1] : vector<8x128xf32> to vector<8xf32>
    %19 = vector.shape_cast %18 : vector<8xf32> to vector<8x1xf32>
    %20 = vector.broadcast %19 : vector<8x1xf32> to vector<8x128xf32>
    %21 = arith.divf %17, %20 : vector<8x128xf32>
    %c0_12 = arith.constant 0 : index
    %c0_13 = arith.constant 0 : index
    %22 = vector.load %arg6[%c0_12, %c0_13] : memref<8x128xf32, #tpu.memory_space<vmem>>, vector<8x128xf32>
    tpu.vector_store %arg6[%c0_12, %c0_13], %21 {strides = array<i32>} : memref<8x128xf32, #tpu.memory_space<vmem>>, vector<8x128xf32>,
    return
  }
  func.func @transform_0(%arg0: i32) -> (i32, i32) {
    %c0_i32 = arith.constant 0 : i32
    %c0_i32_0 = arith.constant 0 : i32
    return %arg0, %c0_i32 : i32, i32
  }
  func.func @transform_1(%arg0: i32) -> (i32, i32) {
    %c0_i32 = arith.constant 0 : i32
    %c0_i32_0 = arith.constant 0 : i32
    %c0_i32_1 = arith.constant 0 : i32
    return %c0_i32, %c0_i32_0 : i32, i32
  }
  func.func @transform_2(%arg0: i32) -> (i32, i32) {
    %c0_i32 = arith.constant 0 : i32
    %c0_i32_0 = arith.constant 0 : i32
    %c0_i32_1 = arith.constant 0 : i32
    return %c0_i32, %c0_i32_0 : i32, i32
  }
  func.func @transform_3(%arg0: i32) -> (i32, i32) {
    %c0_i32 = arith.constant 0 : i32
    %c0_i32_0 = arith.constant 0 : i32
    %c0_i32_1 = arith.constant 0 : i32
    return %c0_i32, %c0_i32_0 : i32, i32
  }
  func.func @transform_4(%arg0: i32) -> (i32, i32) {
    %c0_i32 = arith.constant 0 : i32
    %c0_i32_0 = arith.constant 0 : i32
    %c0_i32_1 = arith.constant 0 : i32
    return %c0_i32, %c0_i32_0 : i32, i32
  }
  func.func @transform_5(%arg0: i32) -> (i32, i32) {
    %c0_i32 = arith.constant 0 : i32
    %c0_i32_0 = arith.constant 0 : i32
    return %arg0, %c0_i32 : i32, i32
  }
}

</mosaic_0001>

<llo_original>
// kernel: tpu_custom_call.1
$region0: #{tpu_custom_call.1}
  #allocation0 [shape = 'u32[]', space=smem, size = 0x4, offset = 0x4, fixed_abs, tag = 'smem constant byte address 0x4 - core index']
  #allocation1 [shape = 'u32[144,128]{1,0:T(1,128)}', space=vmem, size = 0x12000, scoped, tag = 'internal scratch']
  %s0 = inlined_call_operand.hbm [shape: f32[8,32], index: 0, kind: input, shape index: {}]
  %s1 = inlined_call_operand.hbm [shape: bf16[32,128], index: 1, kind: input, shape index: {}]
  %s2 = inlined_call_operand.vmem [shape: f32[1,128], index: 2, kind: input, shape index: {}]
  %s3 = inlined_call_operand.hbm [shape: bf16[128,128], index: 3, kind: input, shape index: {}]
  %s4 = inlined_call_operand.vmem [shape: f32[1,128], index: 4, kind: input, shape index: {}]
  %s5 = inlined_call_operand.hbm [shape: f32[8,128], index: 5, kind: output, shape index: {}]
  %s6 = sld [smem:[#allocation0]]
  $region42: #{tpu_custom_call.1} parent=0
    _
  %s8 = ssub.s32 1, %s6
  %s9 = scalar_select 0, %s8, %s6
  $region1: #{tpu_custom_call.1} parent=0
    #allocation2 [shape = 'u8[4096]{0}', space=vmem, size = 0x1000, scoped, tag = 'input window, operand 0, single buffered']
    #allocation3 [shape = 's32[1]{0}', space=sflag, size = 0x4, scoped, tag = 'scoped memory for tpu_custom_call.1']
    #allocation4 [shape = 's32[1]{0}', space=sflag, size = 0x4, scoped, tag = 'scoped memory for tpu_custom_call.1']
    #allocation5 [shape = 'u8[8192]{0}', space=vmem, size = 0x2000, scoped, tag = 'input window, operand 1, single buffered']
    #allocation6 [shape = 's32[1]{0}', space=sflag, size = 0x4, scoped, tag = 'scoped memory for tpu_custom_call.1']
    #allocation7 [shape = 'u8[32768]{0}', space=vmem, size = 0x8000, scoped, tag = 'input window, operand 3, single buffered']
    #allocation8 [shape = 'u8[4096]{0}', space=vmem, size = 0x1000, scoped, tag = 'output window, operand 0, single buffered']
    %10 = vsyncpa [#allocation3], 0
    %11 = vsyncpa [#allocation6], 0
    %12 = vsyncpa [#allocation4], 0
    // Predicated region
    $region2: #{tpu_custom_call.1} parent=1 // pred_check
      _
    $region3: #{tpu_custom_call.1} parent=1 // pred_check_branch
      %14 = sbr.rel (0) target = $region5
    $region4: #{tpu_custom_call.1} parent=1 // pred_region
      %s16 = ssub.s32 128, 128
      %17 = vsyncadd [#allocation3], %s16
      %s19 = sshll.u32 [#allocation2], 4
      %s20 = int_to_ptr.vmem [resolvable:$true] %s19
      %22 = dma.hbm_to_vmem [thread:$0]  %s0, 128, %s20, [#allocation3]
    $region5: #{tpu_custom_call.1} parent=1 // pred_fallthru
      _
    // Predicated region
    $region6: #{tpu_custom_call.1} parent=1 // pred_check
      _
    $region7: #{tpu_custom_call.1} parent=1 // pred_check_branch
      %24 = sbr.rel (0) target = $region9
    $region8: #{tpu_custom_call.1} parent=1 // pred_region
      %s26 = ssub.s32 256, 256
      %27 = vsyncadd [#allocation6], %s26
      %s28 = sshll.u32 [#allocation5], 4
      %s29 = int_to_ptr.vmem [resolvable:$true] %s28
      %34 = dma.hbm_to_vmem [thread:$0]  %s1, 256, %s29, [#allocation6], 64, 64, 4
    $region9: #{tpu_custom_call.1} parent=1 // pred_fallthru
      _
    // Predicated region
    $region10: #{tpu_custom_call.1} parent=1 // pred_check
      _
    $region11: #{tpu_custom_call.1} parent=1 // pred_check_branch
      %36 = sbr.rel (0) target = $region13
    $region12: #{tpu_custom_call.1} parent=1 // pred_region
      _
    $region13: #{tpu_custom_call.1} parent=1 // pred_fallthru
      _
    // Predicated region
    $region14: #{tpu_custom_call.1} parent=1 // pred_check
      _
    $region15: #{tpu_custom_call.1} parent=1 // pred_check_branch
      %38 = sbr.rel (0) target = $region17
    $region16: #{tpu_custom_call.1} parent=1 // pred_region
      %s40 = ssub.s32 1024, 1024
      %41 = vsyncadd [#allocation6], %s40
      %s42 = sshll.u32 [#allocation7], 4
      %s43 = int_to_ptr.vmem [resolvable:$true] %s42
      %48 = dma.hbm_to_vmem [thread:$0]  %s3, 1024, %s43, [#allocation6], 64, 64, 4
    $region17: #{tpu_custom_call.1} parent=1 // pred_fallthru
      _
    // Predicated region
    $region18: #{tpu_custom_call.1} parent=1 // pred_check
      _
    $region19: #{tpu_custom_call.1} parent=1 // pred_check_branch
      %50 = sbr.rel (0) target = $region21
    $region20: #{tpu_custom_call.1} parent=1 // pred_region
      _
    $region21: #{tpu_custom_call.1} parent=1 // pred_fallthru
      _
    // Predicated region
    $region22: #{tpu_custom_call.1} parent=1 // pred_check
      _
    $region23: #{tpu_custom_call.1} parent=1 // pred_check_branch
      %52 = sbr.rel (0) target = $region25
    $region24: #{tpu_custom_call.1} parent=1 // pred_region
      %53 = dma.done [#allocation3], 128
    $region25: #{tpu_custom_call.1} parent=1 // pred_fallthru
      _
    // Predicated region
    $region26: #{tpu_custom_call.1} parent=1 // pred_check
      _
    $region27: #{tpu_custom_call.1} parent=1 // pred_check_branch
      %55 = sbr.rel (0) target = $region29
    $region28: #{tpu_custom_call.1} parent=1 // pred_region
      %56 = dma.done [#allocation6], 256
    $region29: #{tpu_custom_call.1} parent=1 // pred_fallthru
      _
    // Predicated region
    $region30: #{tpu_custom_call.1} parent=1 // pred_check
      _
    $region31: #{tpu_custom_call.1} parent=1 // pred_check_branch
      %58 = sbr.rel (0) target = $region33
    $region32: #{tpu_custom_call.1} parent=1 // pred_region
      %59 = dma.done [#allocation6], 1024
    $region33: #{tpu_custom_call.1} parent=1 // pred_fallthru
      _
    %v61 = vld [vmem:[#allocation2] sm:$0xff]
    %v62 = vpack.c.bf16 %v61, %v61
    %v63 = vld [vmem:[#allocation5] sm:$0xf]
    %v64 = vld [vmem:[#allocation5 + $0x4] sm:$0xf]
    %v65 = vld [vmem:[#allocation5 + $0x8] sm:$0xf]
    %v66 = vld [vmem:[#allocation5 + $0xc] sm:$0xf]
    %v67 = vld [vmem:[%s2] sm:$0x1]
    %v69 = vlaneseq
    %v70 = vshrl.u32 %v69, 7
    %v71 = vsub.s32 0, %v70
    %v72 = vrot.slane %v67, %v71
    %v78 = vunpack.c.l.b16 %v63
    %v79 = vunpack.c.l.b16 %v64
    %v80 = vunpack.c.l.b16 %v65
    %v81 = vunpack.c.l.b16 %v66
    %v82 = vpack.c.b16 %v79, %v78
    %v83 = vpack.c.b16 %v81, %v80
    %vm86 = vcmask 261120
    %v88 = vsel %vm86, %v62, 0
    %90 = vmatprep.subr.bf16.mxu0 0
    %91 = vmatpush1.bf16.msra.mxu0 0
    %92 = vmatprep.subr.bf16.mxu0 0
    %93 = vmatpush1.bf16.msra.mxu0 0
    %94 = vmatprep.subr.bf16.mxu0 0
    %95 = vmatpush1.bf16.msra.mxu0 0
    %96 = vmatprep.subr.bf16.mxu0 0
    %97 = vmatpush1.bf16.msra.mxu0 0
    %98 = vmatprep.subr.bf16.mxu0 0
    %99 = vmatpush1.bf16.msra.mxu0 0
    %100 = vmatprep.subr.bf16.mxu0 0
    %101 = vmatpush1.bf16.msra.mxu0 0
    %102 = vmatprep.subr.bf16.mxu0 0
    %103 = vmatpush1.bf16.msra.mxu0 %v83
    %104 = vmatprep.subr.bf16.mxu0 0
    %105 = vmatpush1.bf16.msra.mxu0 %v82
    %106 = vmatprep.subr.bf16.mxu0 0
    %107 = vmatpush2.bf16.msra.mxu0 0
    %108 = vmatprep.subr.bf16.mxu0 0
    %109 = vmatpush2.bf16.msra.mxu0 0
    %110 = vmatprep.subr.bf16.mxu0 0
    %111 = vmatpush2.bf16.msra.mxu0 0
    %112 = vmatprep.subr.bf16.mxu0 0
    %113 = vmatpush2.bf16.msra.mxu0 0
    %114 = vmatprep.subr.bf16.mxu0 0
    %115 = vmatpush2.bf16.msra.mxu0 0
    %116 = vmatprep.subr.bf16.mxu0 0
    %117 = vmatpush2.bf16.msra.mxu0 0
    %118 = vmatprep.subr.bf16.mxu0 0
    %119 = vmatpush2.bf16.msra.mxu0 0
    %120 = vmatprep.subr.bf16.mxu0 0
    %121 = vmatpush2.bf16.msra.mxu0 0
    %122 = vmatprep.mubr.bf16.mxu0 0
    %123 = vmatmul.mubr.bf16.gmra.mxu0 %v88
    %v124 = vpop.f32.mrf.mxu0
    %v125 = vadd.f32 %v72, %v124
    %v126 = vpop.f32.mrf.mxu0
    %v127 = vpop.f32.mrf.mxu0
    %v128 = vpop.f32.mrf.mxu0
    %129 = vdwg.mxu0
    %v130 = vpack.c.bf16 %v125, %v125
    %v131 = vld [vmem:[#allocation7] sm:$0xf]
    %v132 = vld [vmem:[#allocation7 + $0x4] sm:$0xf]
    %v133 = vld [vmem:[#allocation7 + $0x8] sm:$0xf]
    %v134 = vld [vmem:[#allocation7 + $0xc] sm:$0xf]
    %v135 = vld [vmem:[#allocation7 + $0x10] sm:$0xf]
    %v136 = vld [vmem:[#allocation7 + $0x14] sm:$0xf]
    %v137 = vld [vmem:[#allocation7 + $0x18] sm:$0xf]
    %v138 = vld [vmem:[#allocation7 + $0x1c] sm:$0xf]
    %v139 = vld [vmem:[#allocation7 + $0x20] sm:$0xf]
    %v140 = vld [vmem:[#allocation7 + $0x24] sm:$0xf]
    %v141 = vld [vmem:[#allocation7 + $0x28] sm:$0xf]
    %v142 = vld [vmem:[#allocation7 + $0x2c] sm:$0xf]
    %v143 = vld [vmem:[#allocation7 + $0x30] sm:$0xf]
    %v144 = vld [vmem:[#allocation7 + $0x34] sm:$0xf]
    %v145 = vld [vmem:[#allocation7 + $0x38] sm:$0xf]
    %v146 = vld [vmem:[#allocation7 + $0x3c] sm:$0xf]
    %v147 = vld [vmem:[%s4] sm:$0x1]
    %v149 = vlaneseq
    %v150 = vshrl.u32 %v149, 7
    %v151 = vsub.s32 0, %v150
    %v152 = vrot.slane %v147, %v151
    %v170 = vunpack.c.l.b16 %v131
    %v171 = vunpack.c.l.b16 %v132
    %v172 = vunpack.c.l.b16 %v133
    %v173 = vunpack.c.l.b16 %v134
    %v174 = vunpack.c.l.b16 %v135
    %v175 = vunpack.c.l.b16 %v136
    %v176 = vunpack.c.l.b16 %v137
    %v177 = vunpack.c.l.b16 %v138
    %v178 = vunpack.c.l.b16 %v139
    %v179 = vunpack.c.l.b16 %v140
    %v180 = vunpack.c.l.b16 %v141
    %v181 = vunpack.c.l.b16 %v142
    %v182 = vunpack.c.l.b16 %v143
    %v183 = vunpack.c.l.b16 %v144
    %v184 = vunpack.c.l.b16 %v145
    %v185 = vunpack.c.l.b16 %v146
    %v186 = vpack.c.b16 %v171, %v170
    %v187 = vpack.c.b16 %v173, %v172
    %v188 = vpack.c.b16 %v175, %v174
    %v189 = vpack.c.b16 %v177, %v176
    %v190 = vpack.c.b16 %v179, %v178
    %v191 = vpack.c.b16 %v181, %v180
    %v192 = vpack.c.b16 %v183, %v182
    %v193 = vpack.c.b16 %v185, %v184
    %202 = vmatprep.subr.bf16.mxu0 0
    %203 = vmatpush1.bf16.msra.mxu0 %v193
    %204 = vmatprep.subr.bf16.mxu0 0
    %205 = vmatpush1.bf16.msra.mxu0 %v192
    %206 = vmatprep.subr.bf16.mxu0 0
    %207 = vmatpush1.bf16.msra.mxu0 %v191
    %208 = vmatprep.subr.bf16.mxu0 0
    %209 = vmatpush1.bf16.msra.mxu0 %v190
    %210 = vmatprep.subr.bf16.mxu0 0
    %211 = vmatpush1.bf16.msra.mxu0 %v189
    %212 = vmatprep.subr.bf16.mxu0 0
    %213 = vmatpush1.bf16.msra.mxu0 %v188
    %214 = vmatprep.subr.bf16.mxu0 0
    %215 = vmatpush1.bf16.msra.mxu0 %v187
    %216 = vmatprep.subr.bf16.mxu0 0
    %217 = vmatpush1.bf16.msra.mxu0 %v186
    %218 = vmatprep.subr.bf16.mxu0 0
    %219 = vmatpush2.bf16.msra.mxu0 0
    %220 = vmatprep.subr.bf16.mxu0 0
    %221 = vmatpush2.bf16.msra.mxu0 0
    %222 = vmatprep.subr.bf16.mxu0 0
    %223 = vmatpush2.bf16.msra.mxu0 0
    %224 = vmatprep.subr.bf16.mxu0 0
    %225 = vmatpush2.bf16.msra.mxu0 0
    %226 = vmatprep.subr.bf16.mxu0 0
    %227 = vmatpush2.bf16.msra.mxu0 0
    %228 = vmatprep.subr.bf16.mxu0 0
    %229 = vmatpush2.bf16.msra.mxu0 0
    %230 = vmatprep.subr.bf16.mxu0 0
    %231 = vmatpush2.bf16.msra.mxu0 0
    %232 = vmatprep.subr.bf16.mxu0 0
    %233 = vmatpush2.bf16.msra.mxu0 0
    %234 = vmatprep.mubr.bf16.mxu0 0
    %235 = vmatmul.mubr.bf16.gmra.mxu0 %v130
    %v236 = vpop.f32.mrf.mxu0
    %v237 = vadd.f32 %v152, %v236
    %v238 = vpop.f32.mrf.mxu0
    %v239 = vpop.f32.mrf.mxu0
    %v240 = vpop.f32.mrf.mxu0
    %241 = vdwg.mxu0
    %242 = vmax.xlane.f32.xlu0 %v237
    %v243 = vpop.xlane.xlu0 %242
    %v244 = vsub.f32 %v237, %v243
    %v245 = vmul.f32 %v244, 1.442695
    %v246 = vpow.pop %v245
    %247 = vadd.xlane.f32.xlu0 %v246
    %v248 = vpop.xlane.xlu0 %247
    %v249 = vrcp.pop %v248
    %v250 = vmul.f32 %v246, %v249
    %251 = vst [vmem:[#allocation8] sm:$0xff] %v250
    // Predicated region
    $region34: #{tpu_custom_call.1} parent=1 // pred_check
      _
    $region35: #{tpu_custom_call.1} parent=1 // pred_check_branch
      %253 = sbr.rel (0) target = $region37
    $region36: #{tpu_custom_call.1} parent=1 // pred_region
      %s255 = ssub.s32 128, 128
      %256 = vsyncadd [#allocation4], %s255
      %s258 = sshll.u32 [#allocation8], 4
      %s259 = int_to_ptr.vmem [resolvable:$true] %s258
      %261 = dma.vmem_to_hbm [thread:$0]  %s259, 128, %s5, [#allocation4]
    $region37: #{tpu_custom_call.1} parent=1 // pred_fallthru
      _
    // Predicated region
    $region38: #{tpu_custom_call.1} parent=1 // pred_check
      _
    $region39: #{tpu_custom_call.1} parent=1 // pred_check_branch
      %263 = sbr.rel (0) target = $region41
    $region40: #{tpu_custom_call.1} parent=1 // pred_region
      %264 = dma.done [#allocation4], 128
    $region41: #{tpu_custom_call.1} parent=1 // pred_fallthru
      _
    %265 = vsyncpa [#allocation3], 1
    %266 = vsyncpa [#allocation6], 1
    %267 = vsyncpa [#allocation4], 1

</llo_original>
